<compile_context>
chip_gen: v5e
topology: v5e:2x2
jax: 0.10.0
libtpu: 0.0.40
codegen_flags: <defaults>
</compile_context>

<pallas_src>
import math

import jax
import jax.numpy as jnp
from jax.experimental import pallas as pl
from jax.experimental.pallas import tpu as pltpu


# ---------------- Pallas kernel (elementwise, bandwidth-bound) ----------------

def _add_row_bias_kernel(x_ref, b_ref, o_ref):
    # x_ref: (tile_n, tile_c), b_ref: (1, tile_c) -> broadcast over rows
    # (sublane axis); pure VPU add, lane-dense stores.
    o_ref[...] = x_ref[...] + b_ref[...]


# ---------------- tile-size selection ----------------

_TARGET_TILE_BYTES = 2 * 1024 * 1024   # ~2 MiB/buffer; double-buffered in+out+bias
                                       # ~ 8.5 MiB << 16 MiB v5e scoped-VMEM default.
_MIN_SPLIT_BYTES = 512 * 1024          # arrays >= this get >=2 grid steps (v7x 2-TC).
_MIN_PALLAS_BYTES = 256 * 1024         # below this, plain XLA beats kernel overhead.


def _sublane_pack(dtype):
    """Rows per packed sublane block for this dtype."""
    bits = jnp.dtype(dtype).itemsize * 8
    if bits >= 32:
        return 8
    if bits == 16:
        return 16
    return 32  # int8 / fp8


def _choose_tiles(n, c, dtype):
    """Pick (tile_n, tile_c) for a (n, c) lane-dense elementwise add."""
    itemsize = jnp.dtype(dtype).itemsize
    pack = _sublane_pack(dtype)
    target = _TARGET_TILE_BYTES

    # Column (lane) tile: full width unless even `pack` rows exceed the budget.
    if pack * c * itemsize <= target or c <= 128:
        tile_c = c
    else:
        tile_c = ((target // (pack * itemsize)) // 128) * 128
        tile_c = int(max(128, min(tile_c, c)))

    row_bytes = max(1, tile_c * itemsize)
    tile_n = max(1, target // row_bytes)
    tile_n = min(tile_n, n)
    if tile_n < n:
        # non-full-extent second-to-last block dim: round to sublane packing
        tile_n = max(pack, (tile_n // pack) * pack)
        tile_n = min(tile_n, n)

    # v7x: if everything fits in one tile but the array is big enough to matter,
    # split the row axis so both TensorCores of the parallel grid stream HBM.
    if (tile_n >= n and tile_c >= c
            and n * c * itemsize >= _MIN_SPLIT_BYTES):
        half = max(pack, ((n // 2) // pack) * pack)
        if half < n:
            tile_n = half

    return int(tile_n), int(tile_c)


def _lane_fold_factor(n, c):
    """How many rows to fold into the lane axis to make it 128-dense."""
    if c % 128 == 0:
        return 1
    k = 128 // math.gcd(c, 128)      # smallest k with (k*c) % 128 == 0
    if k > 1 and n % k == 0:
        return k
    if c < 128:
        k2 = pl.cdiv(128, c)         # at least fill one vreg's lanes
        if k2 > 1 and n % k2 == 0:
            return k2
    return 1


# ---------------- pallas_call wrapper ----------------

def _pallas_add_row_bias(x2, b_row):
    """x2: (n, c), b_row: (1, c) -> x2 + b_row, tiled & pipelined."""
    n, c = x2.shape
    tile_n, tile_c = _choose_tiles(n, c, x2.dtype)
    # Column axis is the OUTER (slow) grid axis so the bias block index only
    # changes once per column tile -> the pipeline skips re-fetching the bias
    # on every inner (row) step.
    grid = (pl.cdiv(c, tile_c), pl.cdiv(n, tile_n))
    return pl.pallas_call(
        _add_row_bias_kernel,
        out_shape=jax.ShapeDtypeStruct((n, c), x2.dtype),
        grid=grid,
        in_specs=[
            pl.BlockSpec((tile_n, tile_c), lambda j, i: (i, j)),
            pl.BlockSpec((1, tile_c), lambda j, i: (0, j)),
        ],
        out_specs=pl.BlockSpec((tile_n, tile_c), lambda j, i: (i, j)),
        compiler_params=pltpu.CompilerParams(
            dimension_semantics=("parallel", "parallel")),
    )(x2, b_row)


# ---------------- module ----------------

class AddBias:
    """JAX/Pallas port of the PyTorch AddBias module."""

    def __init__(self, bias, min_pallas_bytes=_MIN_PALLAS_BYTES):
        bias = jnp.asarray(bias)
        c = bias.shape[0]
        # Parameter layout mirrors nn.Parameter(bias.unsqueeze(1)) -> (C, 1).
        # Single source of truth; broadcast layouts are derived from it (cached).
        self._bias = bias.reshape(c, 1)
        self._min_pallas_bytes = int(min_pallas_bytes)
        self._layout_cache = {}

    # -- parameter management (keeps derived layouts consistent) --
    @property
    def bias(self):
        return self._bias

    def set_bias(self, bias):
        bias = jnp.asarray(bias)
        self._bias = bias.reshape(bias.shape[0], 1)
        self._layout_cache.clear()

    # -- derived (cached) bias layouts --
    def _bias_1d(self, dtype):
        return self._bias.reshape(-1).astype(dtype)

    def _row_bias(self, k, dtype):
        # (1, k*C): bias tiled k times (for the row->lane fold).
        key = ("row", int(k), jnp.dtype(dtype).name)
        if key not in self._layout_cache:
            b = self._bias_1d(dtype)
            self._layout_cache[key] = jnp.tile(b, k).reshape(1, -1)
        return self._layout_cache[key]

    def _flat_bias(self, hw, dtype):
        # (1, C*HW): per-channel bias broadcast across flattened spatial dims.
        key = ("flat", int(hw), jnp.dtype(dtype).name)
        if key not in self._layout_cache:
            b = self._bias_1d(dtype)
            c = b.shape[0]
            self._layout_cache[key] = jnp.broadcast_to(
                b.reshape(c, 1), (c, hw)).reshape(1, c * hw)
        return self._layout_cache[key]

    # -- forward --
    def __call__(self, x):
        if x.ndim == 2:
            return self._forward_2d(x)
        elif x.ndim == 4:
            return self._forward_4d(x)
        raise ValueError(f"AddBias expects 2-D or 4-D input, got ndim={x.ndim}")

    def _forward_2d(self, x):
        n, c = x.shape
        if n * c * x.dtype.itemsize < self._min_pallas_bytes:
            # Tiny workload: pallas_call launch/pipeline overhead dominates.
            return x + self._row_bias(1, x.dtype)
        k = _lane_fold_factor(n, c)
        if k > 1:
            # Fold k rows into the lane axis -> full-lane unmasked stores.
            out = _pallas_add_row_bias(
                x.reshape(n // k, k * c), self._row_bias(k, x.dtype))
            return out.reshape(n, c)
        return _pallas_add_row_bias(x, self._row_bias(1, x.dtype))

    def _forward_4d(self, x):
        n, c, h, w = x.shape
        if x.size * x.dtype.itemsize < self._min_pallas_bytes:
            return x + self._bias_1d(x.dtype).reshape(1, c, 1, 1)
        hw = h * w
        # Flatten to (N, C*H*W): lane axis is large & dense, bias is a plain row.
        out = _pallas_add_row_bias(
            x.reshape(n, c * hw), self._flat_bias(hw, x.dtype))
        return out.reshape(n, c, h, w)


# ---------------- demo / correctness check ----------------

if __name__ == "__main__":
    key = jax.random.PRNGKey(0)
    k1, k2, k3, k4, k5 = jax.random.split(key, 5)

    # 4-D NCHW case: batch=2, channels=4, spatial=16x16 -> flattened lanes = 1024.
    N, C, H, W = 2, 4, 16, 16
    x4 = jax.random.normal(k1, (N, C, H, W), dtype=jnp.float32)
    bias4 = jax.random.normal(k2, (C,), dtype=jnp.float32)
    ref4 = x4 + bias4.reshape(1, C, 1, 1)

    mod4_pallas = AddBias(bias4, min_pallas_bytes=0)   # force the Pallas path
    out4 = jax.block_until_ready(mod4_pallas(x4))
    assert out4.shape == x4.shape and out4.dtype == x4.dtype
    assert jnp.allclose(out4, ref4, atol=1e-6, rtol=1e-6)

    # Default dispatch (tiny input -> plain-XLA fallback) must match as well.
    out4_fb = jax.block_until_ready(AddBias(bias4)(x4))
    assert jnp.allclose(out4_fb, ref4, atol=1e-6, rtol=1e-6)

    # 2-D case: batch=2, hidden=32 (forced Pallas, no lane fold possible).
    B, D = 2, 32
    x2 = jax.random.normal(k3, (B, D), dtype=jnp.float32)
    bias2 = jax.random.normal(k4, (D,), dtype=jnp.float32)
    ref2 = x2 + bias2.reshape(1, D)

    mod2_pallas = AddBias(bias2, min_pallas_bytes=0)
    out2 = jax.block_until_ready(mod2_pallas(x2))
    assert out2.shape == x2.shape and out2.dtype == x2.dtype
    assert jnp.allclose(out2, ref2, atol=1e-6, rtol=1e-6)

    # 2-D lane-fold path: batch=64, hidden=32 -> folded to (16, 128) lanes.
    x2b = jax.random.normal(k5, (64, D), dtype=jnp.float32)
    out2b = jax.block_until_ready(mod2_pallas(x2b))
    ref2b = x2b + bias2.reshape(1, D)
    assert out2b.shape == x2b.shape
    assert jnp.allclose(out2b, ref2b, atol=1e-6, rtol=1e-6)

    print("KERNEL_OK")
</pallas_src>

<mosaic_0001>
module attributes {stable_mosaic.version = 11 : i64} {
  func.func @_add_row_bias_kernel(%arg0: i32, %arg1: i32, %arg2: memref<2x1024xf32, #tpu.memory_space<vmem>>, %arg3: memref<1x1024xf32, #tpu.memory_space<vmem>>, %arg4: memref<2x1024xf32, #tpu.memory_space<vmem>>) attributes {dimension_semantics = [#tpu.dimension_semantics<parallel>, #tpu.dimension_semantics<parallel>], iteration_bounds = array<i64: 1, 1>, scalar_prefetch = 0 : i64, scratch_operands = 0 : i64, tpu.core_type = #tpu.core_type<tc>, window_params = [{transform_indices = @transform_0, window_bounds = array<i64: 2, 1024>}, {transform_indices = @transform_1, window_bounds = array<i64: 1, 1024>}, {transform_indices = @transform_2, window_bounds = array<i64: 2, 1024>}]} {
    %c0 = arith.constant 0 : index
    %c0_0 = arith.constant 0 : index
    %0 = vector.load %arg2[%c0, %c0_0] : memref<2x1024xf32, #tpu.memory_space<vmem>>, vector<2x1024xf32>
    %c0_1 = arith.constant 0 : index
    %c0_2 = arith.constant 0 : index
    %1 = vector.load %arg3[%c0_1, %c0_2] : memref<1x1024xf32, #tpu.memory_space<vmem>>, vector<1x1024xf32>
    %2 = vector.broadcast %1 : vector<1x1024xf32> to vector<2x1024xf32>
    %3 = arith.addf %0, %2 : vector<2x1024xf32>
    %c0_3 = arith.constant 0 : index
    %c0_4 = arith.constant 0 : index
    %4 = vector.load %arg4[%c0_3, %c0_4] : memref<2x1024xf32, #tpu.memory_space<vmem>>, vector<2x1024xf32>
    tpu.vector_store %arg4[%c0_3, %c0_4], %3 {strides = array<i32>} : memref<2x1024xf32, #tpu.memory_space<vmem>>, vector<2x1024xf32>,
    return
  }
  func.func @transform_0(%arg0: i32, %arg1: i32) -> (i32, i32) {
    %c0_i32 = arith.constant 0 : i32
    return %arg1, %arg0 : i32, i32
  }
  func.func @transform_1(%arg0: i32, %arg1: i32) -> (i32, i32) {
    %c0_i32 = arith.constant 0 : i32
    %c0_i32_0 = arith.constant 0 : i32
    return %c0_i32, %arg0 : i32, i32
  }
  func.func @transform_2(%arg0: i32, %arg1: i32) -> (i32, i32) {
    %c0_i32 = arith.constant 0 : i32
    return %arg1, %arg0 : i32, i32
  }
}

</mosaic_0001>

<llo_original>
// kernel: tpu_custom_call.1
$region0: #{tpu_custom_call.1}
  #allocation0 [shape = 'u32[]', space=smem, size = 0x4, offset = 0x4, fixed_abs, tag = 'smem constant byte address 0x4 - core index']
  #allocation1 [shape = 'u32[72,128]{1,0:T(1,128)}', space=vmem, size = 0x9000, scoped, tag = 'internal scratch']
  %s0 = inlined_call_operand.hbm [shape: f32[2,1024], index: 0, kind: input, shape index: {}]
  %s1 = inlined_call_operand.hbm [shape: f32[1,1024], index: 1, kind: input, shape index: {}]
  %s2 = inlined_call_operand.hbm [shape: f32[2,1024], index: 2, kind: output, shape index: {}]
  %s3 = sld [smem:[#allocation0]]
  $region26: #{tpu_custom_call.1} parent=0
    _
  %s5 = ssub.s32 1, %s3
  %s6 = scalar_select 0, %s5, %s3
  $region1: #{tpu_custom_call.1} parent=0
    #allocation2 [shape = 'u8[8192]{0}', space=vmem, size = 0x2000, scoped, tag = 'input window, operand 0, single buffered']
    #allocation3 [shape = 's32[1]{0}', space=sflag, size = 0x4, scoped, tag = 'scoped memory for tpu_custom_call.1']
    #allocation4 [shape = 's32[1]{0}', space=sflag, size = 0x4, scoped, tag = 'scoped memory for tpu_custom_call.1']
    #allocation5 [shape = 'u8[4096]{0}', space=vmem, size = 0x1000, scoped, tag = 'input window, operand 1, single buffered']
    #allocation6 [shape = 's32[1]{0}', space=sflag, size = 0x4, scoped, tag = 'scoped memory for tpu_custom_call.1']
    #allocation7 [shape = 'u8[8192]{0}', space=vmem, size = 0x2000, scoped, tag = 'output window, operand 0, single buffered']
    %7 = vsyncpa [#allocation3], 0
    %8 = vsyncpa [#allocation6], 0
    %9 = vsyncpa [#allocation4], 0
    // Predicated region
    $region2: #{tpu_custom_call.1} parent=1 // pred_check
      _
    $region3: #{tpu_custom_call.1} parent=1 // pred_check_branch
      %11 = sbr.rel (0) target = $region5
    $region4: #{tpu_custom_call.1} parent=1 // pred_region
      %13 = vsyncadd [#allocation3], 0
      %s15 = sshll.u32 %s0, 4
      %s16 = int_to_ptr.hbm [resolvable:$true] %s15
      %s17 = sshll.u32 [#allocation2], 4
      %s18 = int_to_ptr.vmem [resolvable:$true] %s17
      %20 = dma.hbm_to_vmem [thread:$0]  %s16, 256, %s18, [#allocation3]
    $region5: #{tpu_custom_call.1} parent=1 // pred_fallthru
      _
    // Predicated region
    $region6: #{tpu_custom_call.1} parent=1 // pred_check
      _
    $region7: #{tpu_custom_call.1} parent=1 // pred_check_branch
      %22 = sbr.rel (0) target = $region9
    $region8: #{tpu_custom_call.1} parent=1 // pred_region
      %24 = vsyncadd [#allocation6], 0
      %s26 = sshll.u32 %s1, 4
      %s27 = int_to_ptr.hbm [resolvable:$true] %s26
      %s28 = sshll.u32 [#allocation5], 4
      %s29 = int_to_ptr.vmem [resolvable:$true] %s28
      %31 = dma.hbm_to_vmem [thread:$0]  %s27, 128, %s29, [#allocation6]
    $region9: #{tpu_custom_call.1} parent=1 // pred_fallthru
      _
    // Predicated region
    $region10: #{tpu_custom_call.1} parent=1 // pred_check
      _
    $region11: #{tpu_custom_call.1} parent=1 // pred_check_branch
      %33 = sbr.rel (0) target = $region13
    $region12: #{tpu_custom_call.1} parent=1 // pred_region
      %35 = dma.done [#allocation3], 256
    $region13: #{tpu_custom_call.1} parent=1 // pred_fallthru
      _
    // Predicated region
    $region14: #{tpu_custom_call.1} parent=1 // pred_check
      _
    $region15: #{tpu_custom_call.1} parent=1 // pred_check_branch
      %37 = sbr.rel (0) target = $region17
    $region16: #{tpu_custom_call.1} parent=1 // pred_region
      %39 = dma.done [#allocation6], 128
    $region17: #{tpu_custom_call.1} parent=1 // pred_fallthru
      _
    %v40 = vld [vmem:[#allocation2] sm:$0xff]
    %v41 = vld [vmem:[#allocation2 + $0x8] sm:$0xff]
    %v42 = vld [vmem:[#allocation5] sm:$0xff]
    %v44 = vperm.slane %v42, 0
    %v45 = vperm.slane %v42, 1
    %v46 = vperm.slane %v42, 2
    %v47 = vperm.slane %v42, 3
    %v48 = vperm.slane %v42, 4
    %v49 = vperm.slane %v42, 5
    %v50 = vperm.slane %v42, 6
    %v51 = vperm.slane %v42, 7
    %v52 = vrot.slane %v45, 6
    %v53 = vrot.slane %v46, 4
    %v54 = vrot.slane %v47, 2
    %v55 = vrot.slane %v49, 6
    %v56 = vrot.slane %v50, 4
    %v57 = vrot.slane %v51, 2
    %vm58 = vcmask 1041408
    %v59 = vsel %vm58, %v44, %v52
    %vm60 = vcmask 1045508
    %v61 = vsel %vm60, %v53, %v54
    %vm62 = vcmask 1043456
    %v63 = vsel %vm62, %v59, %v61
    %v64 = vsel %vm58, %v48, %v55
    %v65 = vsel %vm60, %v56, %v57
    %v66 = vsel %vm62, %v64, %v65
    %v69 = vadd.f32 %v40, %v63
    %v70 = vadd.f32 %v41, %v66
    %71 = vst [vmem:[#allocation7] sm:$0xff] %v69
    %72 = vst [vmem:[#allocation7 + $0x8] sm:$0xff] %v70
    // Predicated region
    $region18: #{tpu_custom_call.1} parent=1 // pred_check
      _
    $region19: #{tpu_custom_call.1} parent=1 // pred_check_branch
      %74 = sbr.rel (0) target = $region21
    $region20: #{tpu_custom_call.1} parent=1 // pred_region
      %76 = vsyncadd [#allocation4], 0
      %s78 = sshll.u32 [#allocation7], 4
      %s79 = int_to_ptr.vmem [resolvable:$true] %s78
      %s80 = sshll.u32 %s2, 4
      %s81 = int_to_ptr.hbm [resolvable:$true] %s80
      %83 = dma.vmem_to_hbm [thread:$0]  %s79, 256, %s81, [#allocation4]
    $region21: #{tpu_custom_call.1} parent=1 // pred_fallthru
      _
    // Predicated region
    $region22: #{tpu_custom_call.1} parent=1 // pred_check
      _
    $region23: #{tpu_custom_call.1} parent=1 // pred_check_branch
      %85 = sbr.rel (0) target = $region25
    $region24: #{tpu_custom_call.1} parent=1 // pred_region
      %87 = dma.done [#allocation4], 256
    $region25: #{tpu_custom_call.1} parent=1 // pred_fallthru
      _
    %88 = vsyncpa [#allocation3], 1
    %89 = vsyncpa [#allocation6], 1
    %90 = vsyncpa [#allocation4], 1

</llo_original>
